<compile_context>
chip_gen: v7x
topology: tpu7x:2x2x1
jax: 0.10.0
libtpu: 0.0.40
codegen_flags: <defaults>
</compile_context>

<pallas_src>
import jax
import jax.numpy as jnp
from jax.experimental import pallas as pl
from jax.experimental.pallas import tpu as pltpu

BN_EPS = 1e-5


def _round_up(x, m):
    return ((x + m - 1) // m) * m


def recsys_mlp_kernel(
    ue_ref, ie_ref, uf_ref, if_ref,            # [TB,E], [TB,E], [TB,n_uf], [TB,n_if]
    w1u_ref, w1i_ref, w1uf_ref, w1if_ref,      # fc1 weight row-slices (BN1-folded)
    b1_ref,                                    # [1, H]   (BN1-folded bias)
    w2_ref, b2_ref,                            # [H, H2], [1, H2] (BN2-folded)
    w3_ref, b3_ref,                            # [1, H2], [1, 1]
    out_ref,                                   # [TB, 1]
):
    # fc1 (+ folded bn1) -> relu        (dropout = identity in eval)
    h1 = (
        jnp.dot(ue_ref[...], w1u_ref[...], preferred_element_type=jnp.float32)
        + jnp.dot(ie_ref[...], w1i_ref[...], preferred_element_type=jnp.float32)
        + jnp.dot(uf_ref[...], w1uf_ref[...], preferred_element_type=jnp.float32)
        + jnp.dot(if_ref[...], w1if_ref[...], preferred_element_type=jnp.float32)
        + b1_ref[...]
    )
    h1 = jnp.maximum(h1, 0.0)

    # fc2 (+ folded bn2) -> relu        (dropout = identity in eval)
    h2 = jnp.dot(h1, w2_ref[...], preferred_element_type=jnp.float32) + b2_ref[...]
    h2 = jnp.maximum(h2, 0.0)

    # fc3: output width 1 -> VPU multiply + lane reduction (skip degenerate MXU tile)
    out = jnp.sum(h2 * w3_ref[...], axis=-1, keepdims=True) + b3_ref[...]
    out_ref[...] = out.astype(out_ref.dtype)


def recsys_forward(user_ids, item_ids, users_info, items_info, params):
    # ---- glue: embedding gathers (data-dependent gather stays in plain JAX) ----
    ue = params["user_embed"][user_ids].astype(jnp.float32)   # [B, E]
    ie = params["item_embed"][item_ids].astype(jnp.float32)   # [B, E]
    uf = users_info.astype(jnp.float32)                       # [B, n_uf]
    itf = items_info.astype(jnp.float32)                      # [B, n_if]

    B = ue.shape[0]
    E = ue.shape[1]
    n_uf = uf.shape[1]
    n_if = itf.shape[1]
    H = params["w1"].shape[1]
    H2 = params["w2"].shape[1]
    D_in = 2 * E + n_uf + n_if

    # ---- fold eval-mode BatchNorm into the linear layers ----
    s1 = params["bn1_gamma"] * jax.lax.rsqrt(params["bn1_var"] + BN_EPS)   # [1, H]
    w1f = params["w1"] * s1                                                # [D_in, H]
    b1f = (params["b1"] - params["bn1_mean"]) * s1 + params["bn1_beta"]    # [1, H]

    s2 = params["bn2_gamma"] * jax.lax.rsqrt(params["bn2_var"] + BN_EPS)   # [1, H2]
    w2f = params["w2"] * s2                                                # [H, H2]
    b2f = (params["b2"] - params["bn2_mean"]) * s2 + params["bn2_beta"]    # [1, H2]

    # Split fc1 weight by input piece (concat order: ue, ie, uf, if).
    w1_ue = w1f[:E]
    w1_ie = w1f[E:2 * E]
    w1_uf = w1f[2 * E:2 * E + n_uf]
    w1_if = w1f[2 * E + n_uf:]

    w3_row = params["w3"].reshape(1, H2)                                   # [1, H2]
    b3 = params["b3"].reshape(1, 1)                                        # [1, 1]

    # ---- batch tiling (pad B to a multiple of the tile) ----
    TB = min(512, _round_up(B, 8))       # multiple of 8 (f32 sublane); big for pipelining
    B_pad = _round_up(B, TB)
    pad = B_pad - B
    if pad:
        ue = jnp.pad(ue, ((0, pad), (0, 0)))
        ie = jnp.pad(ie, ((0, pad), (0, 0)))
        uf = jnp.pad(uf, ((0, pad), (0, 0)))
        itf = jnp.pad(itf, ((0, pad), (0, 0)))
    n_tiles = B_pad // TB

    batch_spec = lambda cols: pl.BlockSpec((TB, cols), lambda i: (i, 0))
    const_spec = lambda r, c: pl.BlockSpec((r, c), lambda i: (0, 0))   # VMEM-resident

    in_specs = [
        batch_spec(E), batch_spec(E), batch_spec(n_uf), batch_spec(n_if),
        const_spec(E, H), const_spec(E, H), const_spec(n_uf, H), const_spec(n_if, H),
        const_spec(1, H),
        const_spec(H, H2), const_spec(1, H2),
        const_spec(1, H2), const_spec(1, 1),
    ]
    out_spec = pl.BlockSpec((TB, 1), lambda i: (i, 0))

    flops = 2 * B_pad * (D_in * H + H * H2 + H2)
    weight_bytes = 4 * (D_in * H + H + H * H2 + H2 + H2 + 1)
    bytes_accessed = B_pad * D_in * 4 + weight_bytes + B_pad * 4

    out = pl.pallas_call(
        recsys_mlp_kernel,
        out_shape=jax.ShapeDtypeStruct((B_pad, 1), jnp.float32),
        grid=(n_tiles,),
        in_specs=in_specs,
        out_specs=out_spec,
        compiler_params=pltpu.CompilerParams(
            dimension_semantics=("parallel",),       # 2 TCs on v7x; neutral on v5e/v6e
            vmem_limit_bytes=32 * 1024 * 1024,       # sized for v7x's 64 MiB physical VMEM
        ),
        cost_estimate=pl.CostEstimate(
            flops=flops, transcendentals=0, bytes_accessed=bytes_accessed
        ),
    )(
        ue, ie, uf, itf,
        w1_ue, w1_ie, w1_uf, w1_if, b1f,
        w2f, b2f,
        w3_row, b3,
    )
    return out[:B]
    # TODO(synk): optional bf16 activation/weight streaming (f32 MXU accumulation)
    # would halve HBM bytes on v6e/v7x; kept f32 here for exact eval-mode parity.


# ---------------- pure-JAX reference (for correctness check) ----------------
def recsys_reference(user_ids, item_ids, users_info, items_info, params):
    ue = params["user_embed"][user_ids]
    ie = params["item_embed"][item_ids]
    x = jnp.concatenate([ue, ie, users_info, items_info], axis=1).astype(jnp.float32)
    h1 = x @ params["w1"] + params["b1"]
    h1 = (h1 - params["bn1_mean"]) * jax.lax.rsqrt(params["bn1_var"] + BN_EPS)
    h1 = h1 * params["bn1_gamma"] + params["bn1_beta"]
    h1 = jnp.maximum(h1, 0.0)
    h2 = h1 @ params["w2"] + params["b2"]
    h2 = (h2 - params["bn2_mean"]) * jax.lax.rsqrt(params["bn2_var"] + BN_EPS)
    h2 = h2 * params["bn2_gamma"] + params["bn2_beta"]
    h2 = jnp.maximum(h2, 0.0)
    return h2 @ params["w3"] + params["b3"]


# ---------------- init (matches PyTorch module's initialization) ----------------
def xavier_uniform(key, fan_in, fan_out):
    # nn.init.xavier_uniform_ on a PyTorch [out, in] weight; we store [in, out].
    limit = (6.0 / (fan_in + fan_out)) ** 0.5
    return jax.random.uniform(
        key, (fan_in, fan_out), minval=-limit, maxval=limit, dtype=jnp.float32
    )


def init_params(key, n_users, n_items, embedding_dim, hidden_size,
                n_item_features, n_user_features):
    d_in = embedding_dim * 2 + n_item_features + n_user_features
    h = hidden_size
    h2 = hidden_size // 2
    keys = jax.random.split(key, 8)

    def lin_bias(k, fan_in, fan_out):
        bound = 1.0 / (fan_in ** 0.5)
        return jax.random.uniform(
            k, (1, fan_out), minval=-bound, maxval=bound, dtype=jnp.float32
        )

    params = {
        # nn.Embedding default init ~ N(0, 1)
        "user_embed": jax.random.normal(keys[0], (n_users, embedding_dim), jnp.float32),
        "item_embed": jax.random.normal(keys[1], (n_items, embedding_dim), jnp.float32),
        "w1": xavier_uniform(keys[2], d_in, h),
        "b1": lin_bias(keys[3], d_in, h),
        "w2": xavier_uniform(keys[4], h, h2),
        "b2": lin_bias(keys[5], h, h2),
        "w3": xavier_uniform(keys[6], h2, 1),
        "b3": lin_bias(keys[7], h2, 1),
        # BatchNorm1d freshly-initialized running stats / affine params.
        "bn1_gamma": jnp.ones((1, h), jnp.float32),
        "bn1_beta": jnp.zeros((1, h), jnp.float32),
        "bn1_mean": jnp.zeros((1, h), jnp.float32),
        "bn1_var": jnp.ones((1, h), jnp.float32),
        "bn2_gamma": jnp.ones((1, h2), jnp.float32),
        "bn2_beta": jnp.zeros((1, h2), jnp.float32),
        "bn2_mean": jnp.zeros((1, h2), jnp.float32),
        "bn2_var": jnp.ones((1, h2), jnp.float32),
    }
    return params


if __name__ == "__main__":
    # Small, module-consistent shapes.  (Note: at these toy sizes launch/grid
    # overhead dominates — the tiling pays off at batch sizes in the thousands.)
    n_users, n_items = 32, 64
    embedding_dim = 16
    hidden_size = 32
    n_item_features = 8
    n_user_features = 8
    batch = 8

    key = jax.random.PRNGKey(0)
    pkey, k_u, k_i, k_uf, k_if = jax.random.split(key, 5)

    params = init_params(pkey, n_users, n_items, embedding_dim, hidden_size,
                         n_item_features, n_user_features)

    user_ids = jax.random.randint(k_u, (batch,), 0, n_users)
    item_ids = jax.random.randint(k_i, (batch,), 0, n_items)
    users_info = jax.random.normal(k_uf, (batch, n_user_features), jnp.float32)
    items_info = jax.random.normal(k_if, (batch, n_item_features), jnp.float32)

    out = recsys_forward(user_ids, item_ids, users_info, items_info, params)
    jax.block_until_ready(out)
    assert out.shape == (batch, 1), out.shape

    ref = recsys_reference(user_ids, item_ids, users_info, items_info, params)
    assert jnp.allclose(out, ref, atol=1e-4, rtol=1e-4), (
        float(jnp.max(jnp.abs(out - ref)))
    )

    # TODO(synk): training-mode Dropout (random mask) and batch-statistics
    # BatchNorm are not reproduced; eval-mode semantics are implemented.
    print("KERNEL_OK")
</pallas_src>

<mosaic_0001>
module attributes {stable_mosaic.version = 11 : i64} {
  func.func @recsys_mlp_kernel(%arg0: i32, %arg1: memref<8x16xf32, #tpu.memory_space<vmem>>, %arg2: memref<8x16xf32, #tpu.memory_space<vmem>>, %arg3: memref<8x8xf32, #tpu.memory_space<vmem>>, %arg4: memref<8x8xf32, #tpu.memory_space<vmem>>, %arg5: memref<16x32xf32, #tpu.memory_space<vmem>>, %arg6: memref<16x32xf32, #tpu.memory_space<vmem>>, %arg7: memref<8x32xf32, #tpu.memory_space<vmem>>, %arg8: memref<8x32xf32, #tpu.memory_space<vmem>>, %arg9: memref<1x32xf32, #tpu.memory_space<vmem>>, %arg10: memref<32x16xf32, #tpu.memory_space<vmem>>, %arg11: memref<1x16xf32, #tpu.memory_space<vmem>>, %arg12: memref<1x16xf32, #tpu.memory_space<vmem>>, %arg13: memref<1x1xf32, #tpu.memory_space<vmem>>, %arg14: memref<8x1xf32, #tpu.memory_space<vmem>>) attributes {dimension_semantics = [#tpu.dimension_semantics<parallel>], iteration_bounds = array<i64: 1>, scalar_prefetch = 0 : i64, scratch_operands = 0 : i64, tpu.core_type = #tpu.core_type<tc>, window_params = [{transform_indices = @transform_0, window_bounds = array<i64: 8, 16>}, {transform_indices = @transform_1, window_bounds = array<i64: 8, 16>}, {transform_indices = @transform_2, window_bounds = array<i64: 8, 8>}, {transform_indices = @transform_3, window_bounds = array<i64: 8, 8>}, {pipeline_mode = #tpu.pipeline_mode<synchronous>, transform_indices = @transform_4, window_bounds = array<i64: 16, 32>}, {pipeline_mode = #tpu.pipeline_mode<synchronous>, transform_indices = @transform_5, window_bounds = array<i64: 16, 32>}, {pipeline_mode = #tpu.pipeline_mode<synchronous>, transform_indices = @transform_6, window_bounds = array<i64: 8, 32>}, {pipeline_mode = #tpu.pipeline_mode<synchronous>, transform_indices = @transform_7, window_bounds = array<i64: 8, 32>}, {pipeline_mode = #tpu.pipeline_mode<synchronous>, transform_indices = @transform_8, window_bounds = array<i64: 1, 32>}, {pipeline_mode = #tpu.pipeline_mode<synchronous>, transform_indices = @transform_9, window_bounds = array<i64: 32, 16>}, {pipeline_mode = #tpu.pipeline_mode<synchronous>, transform_indices = @transform_10, window_bounds = array<i64: 1, 16>}, {pipeline_mode = #tpu.pipeline_mode<synchronous>, transform_indices = @transform_11, window_bounds = array<i64: 1, 16>}, {pipeline_mode = #tpu.pipeline_mode<synchronous>, transform_indices = @transform_12, window_bounds = array<i64: 1, 1>}, {transform_indices = @transform_13, window_bounds = array<i64: 8, 1>}]} {
    %c0 = arith.constant 0 : index
    %c0_0 = arith.constant 0 : index
    %0 = vector.load %arg1[%c0, %c0_0] : memref<8x16xf32, #tpu.memory_space<vmem>>, vector<8x16xf32>
    %c0_1 = arith.constant 0 : index
    %c0_2 = arith.constant 0 : index
    %1 = vector.load %arg5[%c0_1, %c0_2] : memref<16x32xf32, #tpu.memory_space<vmem>>, vector<16x32xf32>
    %cst = arith.constant dense<0.000000e+00> : vector<8x32xf32>
    %2 = tpu.matmul %0, %1, %cst {dimension_numbers = #tpu.dot_dimension_numbers<[1], [0], [0], [1], [0, 0, 1, 1], [], []>} : vector<8x16xf32>, vector<16x32xf32>, vector<8x32xf32> -> vector<8x32xf32>
    %c0_3 = arith.constant 0 : index
    %c0_4 = arith.constant 0 : index
    %3 = vector.load %arg2[%c0_3, %c0_4] : memref<8x16xf32, #tpu.memory_space<vmem>>, vector<8x16xf32>
    %c0_5 = arith.constant 0 : index
    %c0_6 = arith.constant 0 : index
    %4 = vector.load %arg6[%c0_5, %c0_6] : memref<16x32xf32, #tpu.memory_space<vmem>>, vector<16x32xf32>
    %cst_7 = arith.constant dense<0.000000e+00> : vector<8x32xf32>
    %5 = tpu.matmul %3, %4, %cst_7 {dimension_numbers = #tpu.dot_dimension_numbers<[1], [0], [0], [1], [0, 0, 1, 1], [], []>} : vector<8x16xf32>, vector<16x32xf32>, vector<8x32xf32> -> vector<8x32xf32>
    %6 = arith.addf %2, %5 : vector<8x32xf32>
    %c0_8 = arith.constant 0 : index
    %c0_9 = arith.constant 0 : index
    %7 = vector.load %arg3[%c0_8, %c0_9] : memref<8x8xf32, #tpu.memory_space<vmem>>, vector<8x8xf32>
    %c0_10 = arith.constant 0 : index
    %c0_11 = arith.constant 0 : index
    %8 = vector.load %arg7[%c0_10, %c0_11] : memref<8x32xf32, #tpu.memory_space<vmem>>, vector<8x32xf32>
    %cst_12 = arith.constant dense<0.000000e+00> : vector<8x32xf32>
    %9 = tpu.matmul %7, %8, %cst_12 {dimension_numbers = #tpu.dot_dimension_numbers<[1], [0], [0], [1], [0, 0, 1, 1], [], []>} : vector<8x8xf32>, vector<8x32xf32>, vector<8x32xf32> -> vector<8x32xf32>
    %10 = arith.addf %6, %9 : vector<8x32xf32>
    %c0_13 = arith.constant 0 : index
    %c0_14 = arith.constant 0 : index
    %11 = vector.load %arg4[%c0_13, %c0_14] : memref<8x8xf32, #tpu.memory_space<vmem>>, vector<8x8xf32>
    %c0_15 = arith.constant 0 : index
    %c0_16 = arith.constant 0 : index
    %12 = vector.load %arg8[%c0_15, %c0_16] : memref<8x32xf32, #tpu.memory_space<vmem>>, vector<8x32xf32>
    %cst_17 = arith.constant dense<0.000000e+00> : vector<8x32xf32>
    %13 = tpu.matmul %11, %12, %cst_17 {dimension_numbers = #tpu.dot_dimension_numbers<[1], [0], [0], [1], [0, 0, 1, 1], [], []>} : vector<8x8xf32>, vector<8x32xf32>, vector<8x32xf32> -> vector<8x32xf32>
    %14 = arith.addf %10, %13 : vector<8x32xf32>
    %c0_18 = arith.constant 0 : index
    %c0_19 = arith.constant 0 : index
    %15 = vector.load %arg9[%c0_18, %c0_19] : memref<1x32xf32, #tpu.memory_space<vmem>>, vector<1x32xf32>
    %16 = vector.broadcast %15 : vector<1x32xf32> to vector<8x32xf32>
    %17 = arith.addf %14, %16 : vector<8x32xf32>
    %cst_20 = arith.constant 0.000000e+00 : f32
    %18 = vector.broadcast %cst_20 : f32 to vector<8x32xf32>
    %19 = arith.maximumf %17, %18 : vector<8x32xf32>
    %c0_21 = arith.constant 0 : index
    %c0_22 = arith.constant 0 : index
    %20 = vector.load %arg10[%c0_21, %c0_22] : memref<32x16xf32, #tpu.memory_space<vmem>>, vector<32x16xf32>
    %cst_23 = arith.constant dense<0.000000e+00> : vector<8x16xf32>
    %21 = tpu.matmul %19, %20, %cst_23 {dimension_numbers = #tpu.dot_dimension_numbers<[1], [0], [0], [1], [0, 0, 1, 1], [], []>} : vector<8x32xf32>, vector<32x16xf32>, vector<8x16xf32> -> vector<8x16xf32>
    %c0_24 = arith.constant 0 : index
    %c0_25 = arith.constant 0 : index
    %22 = vector.load %arg11[%c0_24, %c0_25] : memref<1x16xf32, #tpu.memory_space<vmem>>, vector<1x16xf32>
    %23 = vector.broadcast %22 : vector<1x16xf32> to vector<8x16xf32>
    %24 = arith.addf %21, %23 : vector<8x16xf32>
    %cst_26 = arith.constant 0.000000e+00 : f32
    %25 = vector.broadcast %cst_26 : f32 to vector<8x16xf32>
    %26 = arith.maximumf %24, %25 : vector<8x16xf32>
    %c0_27 = arith.constant 0 : index
    %c0_28 = arith.constant 0 : index
    %27 = vector.load %arg12[%c0_27, %c0_28] : memref<1x16xf32, #tpu.memory_space<vmem>>, vector<1x16xf32>
    %28 = vector.broadcast %27 : vector<1x16xf32> to vector<8x16xf32>
    %29 = arith.mulf %26, %28 : vector<8x16xf32>
    %cst_29 = arith.constant dense<0.000000e+00> : vector<8xf32>
    %30 = vector.multi_reduction <add>, %29, %cst_29 [1] : vector<8x16xf32> to vector<8xf32>
    %31 = vector.shape_cast %30 : vector<8xf32> to vector<8x1xf32>
    %c0_30 = arith.constant 0 : index
    %c0_31 = arith.constant 0 : index
    %32 = vector.load %arg13[%c0_30, %c0_31] : memref<1x1xf32, #tpu.memory_space<vmem>>, vector<1x1xf32>
    %33 = vector.broadcast %32 : vector<1x1xf32> to vector<8x1xf32>
    %34 = arith.addf %31, %33 : vector<8x1xf32>
    %c0_32 = arith.constant 0 : index
    %c0_33 = arith.constant 0 : index
    %35 = vector.load %arg14[%c0_32, %c0_33] : memref<8x1xf32, #tpu.memory_space<vmem>>, vector<8x1xf32>
    tpu.vector_store %arg14[%c0_32, %c0_33], %34 {strides = array<i32>} : memref<8x1xf32, #tpu.memory_space<vmem>>, vector<8x1xf32>,
    return
  }
  func.func @transform_0(%arg0: i32) -> (i32, i32) {
    %c0_i32 = arith.constant 0 : i32
    %c0_i32_0 = arith.constant 0 : i32
    return %arg0, %c0_i32 : i32, i32
  }
  func.func @transform_1(%arg0: i32) -> (i32, i32) {
    %c0_i32 = arith.constant 0 : i32
    %c0_i32_0 = arith.constant 0 : i32
    return %arg0, %c0_i32 : i32, i32
  }
  func.func @transform_2(%arg0: i32) -> (i32, i32) {
    %c0_i32 = arith.constant 0 : i32
    %c0_i32_0 = arith.constant 0 : i32
    return %arg0, %c0_i32 : i32, i32
  }
  func.func @transform_3(%arg0: i32) -> (i32, i32) {
    %c0_i32 = arith.constant 0 : i32
    %c0_i32_0 = arith.constant 0 : i32
    return %arg0, %c0_i32 : i32, i32
  }
  func.func @transform_4(%arg0: i32) -> (i32, i32) {
    %c0_i32 = arith.constant 0 : i32
    %c0_i32_0 = arith.constant 0 : i32
    %c0_i32_1 = arith.constant 0 : i32
    return %c0_i32, %c0_i32_0 : i32, i32
  }
  func.func @transform_5(%arg0: i32) -> (i32, i32) {
    %c0_i32 = arith.constant 0 : i32
    %c0_i32_0 = arith.constant 0 : i32
    %c0_i32_1 = arith.constant 0 : i32
    return %c0_i32, %c0_i32_0 : i32, i32
  }
  func.func @transform_6(%arg0: i32) -> (i32, i32) {
    %c0_i32 = arith.constant 0 : i32
    %c0_i32_0 = arith.constant 0 : i32
    %c0_i32_1 = arith.constant 0 : i32
    return %c0_i32, %c0_i32_0 : i32, i32
  }
  func.func @transform_7(%arg0: i32) -> (i32, i32) {
    %c0_i32 = arith.constant 0 : i32
    %c0_i32_0 = arith.constant 0 : i32
    %c0_i32_1 = arith.constant 0 : i32
    return %c0_i32, %c0_i32_0 : i32, i32
  }
  func.func @transform_8(%arg0: i32) -> (i32, i32) {
    %c0_i32 = arith.constant 0 : i32
    %c0_i32_0 = arith.constant 0 : i32
    %c0_i32_1 = arith.constant 0 : i32
    return %c0_i32, %c0_i32_0 : i32, i32
  }
  func.func @transform_9(%arg0: i32) -> (i32, i32) {
    %c0_i32 = arith.constant 0 : i32
    %c0_i32_0 = arith.constant 0 : i32
    %c0_i32_1 = arith.constant 0 : i32
    return %c0_i32, %c0_i32_0 : i32, i32
  }
  func.func @transform_10(%arg0: i32) -> (i32, i32) {
    %c0_i32 = arith.constant 0 : i32
    %c0_i32_0 = arith.constant 0 : i32
    %c0_i32_1 = arith.constant 0 : i32
    return %c0_i32, %c0_i32_0 : i32, i32
  }
  func.func @transform_11(%arg0: i32) -> (i32, i32) {
    %c0_i32 = arith.constant 0 : i32
    %c0_i32_0 = arith.constant 0 : i32
    %c0_i32_1 = arith.constant 0 : i32
    return %c0_i32, %c0_i32_0 : i32, i32
  }
  func.func @transform_12(%arg0: i32) -> (i32, i32) {
    %c0_i32 = arith.constant 0 : i32
    %c0_i32_0 = arith.constant 0 : i32
    %c0_i32_1 = arith.constant 0 : i32
    return %c0_i32, %c0_i32_0 : i32, i32
  }
  func.func @transform_13(%arg0: i32) -> (i32, i32) {
    %c0_i32 = arith.constant 0 : i32
    %c0_i32_0 = arith.constant 0 : i32
    return %arg0, %c0_i32 : i32, i32
  }
}

</mosaic_0001>

<llo_original>
// kernel: tpu_custom_call.1
$region0: #{tpu_custom_call.1}
  #allocation0 [shape = 'u32[]', space=smem, size = 0x4, offset = 0x4, fixed_abs, tag = 'smem constant byte address 0x4 - core index']
  #allocation1 [shape = 'u32[144,128]{1,0:T(1,128)}', space=vmem, size = 0x12000, scoped, tag = 'internal scratch']
  #allocation2 [shape = 'f32[1,1]{1,0:T(1,128)S(1)}', space=vmem, size = 0x200, scoped, tag = 'scoped memory for tpu_custom_call.1']
  %s0 = inlined_call_operand.vmem [shape: f32[8,16], index: 0, kind: input, shape index: {}]
  %s1 = inlined_call_operand.vmem [shape: f32[8,16], index: 1, kind: input, shape index: {}]
  %s2 = inlined_call_operand.vmem [shape: f32[8,8], index: 2, kind: input, shape index: {}]
  %s3 = inlined_call_operand.hbm [shape: f32[8,8], index: 3, kind: input, shape index: {}]
  %s4 = inlined_call_operand.vmem [shape: f32[16,32], index: 4, kind: input, shape index: {}]
  %s5 = inlined_call_operand.vmem [shape: f32[16,32], index: 5, kind: input, shape index: {}]
  %s6 = inlined_call_operand.hbm [shape: f32[8,32], index: 6, kind: input, shape index: {}]
  %s7 = inlined_call_operand.hbm [shape: f32[8,32], index: 7, kind: input, shape index: {}]
  %s8 = inlined_call_operand.vmem [shape: f32[1,32], index: 8, kind: input, shape index: {}]
  %s9 = inlined_call_operand.vmem [shape: f32[32,16], index: 9, kind: input, shape index: {}]
  %s10 = inlined_call_operand.vmem [shape: f32[1,16], index: 10, kind: input, shape index: {}]
  %s11 = inlined_call_operand.vmem [shape: f32[1,16], index: 11, kind: input, shape index: {}]
  %s12 = inlined_call_operand.<no memory space> [shape: f32[1,1], index: 12, kind: input, shape index: {}]
  %s13 = inlined_call_operand.vmem [shape: f32[8,1], index: 13, kind: output, shape index: {}]
  %s14 = sld [smem:[#allocation0]]
  $region74: #{tpu_custom_call.1} parent=0
    _
  %s16 = ssub.s32 1, %s14
  %s17 = scalar_select 0, %s16, %s14
  %v18 = vstv %s12
  %19 = vst [vmem:[#allocation2] sm:$0x1] %v18
  $region1: #{tpu_custom_call.1} parent=0
    #allocation3 [shape = 'u8[4096]{0}', space=vmem, size = 0x1000, scoped, tag = 'input window, operand 3, single buffered']
    #allocation4 [shape = 's32[1]{0}', space=sflag, size = 0x4, scoped, tag = 'scoped memory for tpu_custom_call.1']
    #allocation5 [shape = 'u8[4096]{0}', space=vmem, size = 0x1000, scoped, tag = 'input window, operand 6, single buffered']
    #allocation6 [shape = 's32[1]{0}', space=sflag, size = 0x4, scoped, tag = 'scoped memory for tpu_custom_call.1']
    #allocation7 [shape = 'u8[4096]{0}', space=vmem, size = 0x1000, scoped, tag = 'input window, operand 7, single buffered']
    %20 = vsyncpa [#allocation4], 0
    %21 = vsyncpa [#allocation6], 0
    // Predicated region
    $region2: #{tpu_custom_call.1} parent=1 // pred_check
      _
    $region3: #{tpu_custom_call.1} parent=1 // pred_check_branch
      %23 = sbr.rel (0) target = $region5
    $region4: #{tpu_custom_call.1} parent=1 // pred_region
      _
    $region5: #{tpu_custom_call.1} parent=1 // pred_fallthru
      _
    // Predicated region
    $region6: #{tpu_custom_call.1} parent=1 // pred_check
      _
    $region7: #{tpu_custom_call.1} parent=1 // pred_check_branch
      %25 = sbr.rel (0) target = $region9
    $region8: #{tpu_custom_call.1} parent=1 // pred_region
      _
    $region9: #{tpu_custom_call.1} parent=1 // pred_fallthru
      _
    // Predicated region
    $region10: #{tpu_custom_call.1} parent=1 // pred_check
      _
    $region11: #{tpu_custom_call.1} parent=1 // pred_check_branch
      %27 = sbr.rel (0) target = $region13
    $region12: #{tpu_custom_call.1} parent=1 // pred_region
      _
    $region13: #{tpu_custom_call.1} parent=1 // pred_fallthru
      _
    // Predicated region
    $region14: #{tpu_custom_call.1} parent=1 // pred_check
      _
    $region15: #{tpu_custom_call.1} parent=1 // pred_check_branch
      %29 = sbr.rel (0) target = $region17
    $region16: #{tpu_custom_call.1} parent=1 // pred_region
      %s31 = ssub.s32 128, 128
      %32 = vsyncadd [#allocation4], %s31
      %s34 = sshll.u32 [#allocation3], 4
      %s35 = int_to_ptr.vmem [resolvable:$true] %s34
      %37 = dma.hbm_to_vmem [thread:$0]  %s3, 128, %s35, [#allocation4]
    $region17: #{tpu_custom_call.1} parent=1 // pred_fallthru
      _
    // Predicated region
    $region18: #{tpu_custom_call.1} parent=1 // pred_check
      _
    $region19: #{tpu_custom_call.1} parent=1 // pred_check_branch
      %39 = sbr.rel (0) target = $region21
    $region20: #{tpu_custom_call.1} parent=1 // pred_region
      _
    $region21: #{tpu_custom_call.1} parent=1 // pred_fallthru
      _
    // Predicated region
    $region22: #{tpu_custom_call.1} parent=1 // pred_check
      _
    $region23: #{tpu_custom_call.1} parent=1 // pred_check_branch
      %41 = sbr.rel (0) target = $region25
    $region24: #{tpu_custom_call.1} parent=1 // pred_region
      _
    $region25: #{tpu_custom_call.1} parent=1 // pred_fallthru
      _
    // Predicated region
    $region26: #{tpu_custom_call.1} parent=1 // pred_check
      _
    $region27: #{tpu_custom_call.1} parent=1 // pred_check_branch
      %43 = sbr.rel (0) target = $region29
    $region28: #{tpu_custom_call.1} parent=1 // pred_region
      %s45 = ssub.s32 128, 128
      %46 = vsyncadd [#allocation6], %s45
      %s48 = sshll.u32 [#allocation5], 4
      %s49 = int_to_ptr.vmem [resolvable:$true] %s48
      %51 = dma.hbm_to_vmem [thread:$0]  %s6, 128, %s49, [#allocation6]
    $region29: #{tpu_custom_call.1} parent=1 // pred_fallthru
      _
    // Predicated region
    $region30: #{tpu_custom_call.1} parent=1 // pred_check
      _
    $region31: #{tpu_custom_call.1} parent=1 // pred_check_branch
      %53 = sbr.rel (0) target = $region33
    $region32: #{tpu_custom_call.1} parent=1 // pred_region
      %s55 = ssub.s32 128, 128
      %56 = vsyncadd [#allocation6], %s55
      %s58 = sshll.u32 [#allocation7], 4
      %s59 = int_to_ptr.vmem [resolvable:$true] %s58
      %61 = dma.hbm_to_vmem [thread:$0]  %s7, 128, %s59, [#allocation6]
    $region33: #{tpu_custom_call.1} parent=1 // pred_fallthru
      _
    // Predicated region
    $region34: #{tpu_custom_call.1} parent=1 // pred_check
      _
    $region35: #{tpu_custom_call.1} parent=1 // pred_check_branch
      %63 = sbr.rel (0) target = $region37
    $region36: #{tpu_custom_call.1} parent=1 // pred_region
      _
    $region37: #{tpu_custom_call.1} parent=1 // pred_fallthru
      _
    // Predicated region
    $region38: #{tpu_custom_call.1} parent=1 // pred_check
      _
    $region39: #{tpu_custom_call.1} parent=1 // pred_check_branch
      %65 = sbr.rel (0) target = $region41
    $region40: #{tpu_custom_call.1} parent=1 // pred_region
      _
    $region41: #{tpu_custom_call.1} parent=1 // pred_fallthru
      _
    // Predicated region
    $region42: #{tpu_custom_call.1} parent=1 // pred_check
      _
    $region43: #{tpu_custom_call.1} parent=1 // pred_check_branch
      %67 = sbr.rel (0) target = $region45
    $region44: #{tpu_custom_call.1} parent=1 // pred_region
      _
    $region45: #{tpu_custom_call.1} parent=1 // pred_fallthru
      _
    // Predicated region
    $region46: #{tpu_custom_call.1} parent=1 // pred_check
      _
    $region47: #{tpu_custom_call.1} parent=1 // pred_check_branch
      %69 = sbr.rel (0) target = $region49
    $region48: #{tpu_custom_call.1} parent=1 // pred_region
      _
    $region49: #{tpu_custom_call.1} parent=1 // pred_fallthru
      _
    // Predicated region
    $region50: #{tpu_custom_call.1} parent=1 // pred_check
      _
    $region51: #{tpu_custom_call.1} parent=1 // pred_check_branch
      %71 = sbr.rel (0) target = $region53
    $region52: #{tpu_custom_call.1} parent=1 // pred_region
      _
    $region53: #{tpu_custom_call.1} parent=1 // pred_fallthru
      _
    // Predicated region
    $region54: #{tpu_custom_call.1} parent=1 // pred_check
      _
    $region55: #{tpu_custom_call.1} parent=1 // pred_check_branch
      %73 = sbr.rel (0) target = $region57
    $region56: #{tpu_custom_call.1} parent=1 // pred_region
      %74 = dma.done [#allocation4], 128
    $region57: #{tpu_custom_call.1} parent=1 // pred_fallthru
      _
    // Predicated region
    $region58: #{tpu_custom_call.1} parent=1 // pred_check
      _
    $region59: #{tpu_custom_call.1} parent=1 // pred_check_branch
      %76 = sbr.rel (0) target = $region61
    $region60: #{tpu_custom_call.1} parent=1 // pred_region
      %77 = dma.done [#allocation6], 128
    $region61: #{tpu_custom_call.1} parent=1 // pred_fallthru
      _
    // Predicated region
    $region62: #{tpu_custom_call.1} parent=1 // pred_check
      _
    $region63: #{tpu_custom_call.1} parent=1 // pred_check_branch
      %79 = sbr.rel (0) target = $region65
    $region64: #{tpu_custom_call.1} parent=1 // pred_region
      %80 = dma.done [#allocation6], 128
    $region65: #{tpu_custom_call.1} parent=1 // pred_fallthru
      _
    %v81 = vld [vmem:[%s0] sm:$0xff]
    %v82 = vld [vmem:[%s4] sm:$0xff]
    %v83 = vld [vmem:[%s4 + $0x8] sm:$0xff]
    %v84 = vld [vmem:[%s1] sm:$0xff]
    %v85 = vld [vmem:[%s5] sm:$0xff]
    %v86 = vld [vmem:[%s5 + $0x8] sm:$0xff]
    %vm87 = vcmask 130048
    %v89 = vsel %vm87, %v84, 0
    %91 = vmatprep.subr.mxu0 0.0
    %92 = vmatpush1.msra.mxu0 %v85
    %93 = vmatprep.subr.mxu0 0.0
    %94 = vmatpush1.msra.mxu0 %v86
    %95 = vmatprep.subr.mxu0 0.0
    %96 = vmatpush1.msra.mxu0 0.0
    %97 = vmatprep.subr.mxu0 0.0
    %98 = vmatpush1.msra.mxu0 0.0
    %99 = vmatprep.subr.mxu0 0.0
    %100 = vmatpush1.msra.mxu0 0.0
    %101 = vmatprep.subr.mxu0 0.0
    %102 = vmatpush1.msra.mxu0 0.0
    %103 = vmatprep.subr.mxu0 0.0
    %104 = vmatpush1.msra.mxu0 0.0
    %105 = vmatprep.subr.mxu0 0.0
    %106 = vmatpush1.msra.mxu0 0.0
    %107 = vmatprep.subr.mxu0 0.0
    %108 = vmatpush1.msra.mxu0 0.0
    %109 = vmatprep.subr.mxu0 0.0
    %110 = vmatpush1.msra.mxu0 0.0
    %111 = vmatprep.subr.mxu0 0.0
    %112 = vmatpush1.msra.mxu0 0.0
    %113 = vmatprep.subr.mxu0 0.0
    %114 = vmatpush1.msra.mxu0 0.0
    %115 = vmatprep.subr.mxu0 0.0
    %116 = vmatpush1.msra.mxu0 0.0
    %117 = vmatprep.subr.mxu0 0.0
    %118 = vmatpush1.msra.mxu0 0.0
    %119 = vmatprep.subr.mxu0 0.0
    %120 = vmatpush1.msra.mxu0 0.0
    %121 = vmatprep.subr.mxu0 0.0
    %122 = vmatpush1.msra.mxu0 0.0
    %123 = vmatprep.subr.mxu0 0.0
    %124 = vmatpush1.msra.mxu0 0.0
    %125 = vmatprep.subr.mxu0 0.0
    %126 = vmatpush1.msra.mxu0 0.0
    %127 = vmatprep.subr.mxu0 0.0
    %128 = vmatpush1.msra.mxu0 0.0
    %129 = vmatprep.subr.mxu0 0.0
    %130 = vmatpush1.msra.mxu0 0.0
    %131 = vmatprep.subr.mxu0 0.0
    %132 = vmatpush1.msra.mxu0 0.0
    %133 = vmatprep.subr.mxu0 0.0
    %134 = vmatpush1.msra.mxu0 0.0
    %135 = vmatprep.subr.mxu0 0.0
    %136 = vmatpush1.msra.mxu0 0.0
    %137 = vmatprep.subr.mxu0 0.0
    %138 = vmatpush1.msra.mxu0 0.0
    %139 = vmatprep.subr.mxu0 0.0
    %140 = vmatpush1.msra.mxu0 0.0
    %141 = vmatprep.subr.mxu0 0.0
    %142 = vmatpush1.msra.mxu0 0.0
    %143 = vmatprep.subr.mxu0 0.0
    %144 = vmatpush1.msra.mxu0 0.0
    %145 = vmatprep.subr.mxu0 0.0
    %146 = vmatpush1.msra.mxu0 0.0
    %147 = vmatprep.subr.mxu0 0.0
    %148 = vmatpush1.msra.mxu0 0.0
    %149 = vmatprep.subr.mxu0 0.0
    %150 = vmatpush1.msra.mxu0 0.0
    %151 = vmatprep.subr.mxu0 0.0
    %152 = vmatpush1.msra.mxu0 0.0
    %153 = vmatprep.subr.mxu0 0.0
    %154 = vmatpush1.msra.mxu0 0.0
    %155 = vmatprep.mubr.f32.mxu0 0.0
    %156 = vmatmul.mubr.f32.gmra.mrb[0].mxu0 %v89
    %v157 = vpop.f32.mrb[0].mxu0
    %v158 = vadd.f32 0.0, %v157
    %v159 = vpop.f32.mrb[0].mxu0
    %160 = vdwg.mxu0
    %v162 = vsel %vm87, %v81, 0
    %164 = vmatprep.subr.mxu0 0.0
    %165 = vmatpush1.msra.mxu0 %v82
    %166 = vmatprep.subr.mxu0 0.0
    %167 = vmatpush1.msra.mxu0 %v83
    %168 = vmatprep.subr.mxu0 0.0
    %169 = vmatpush1.msra.mxu0 0.0
    %170 = vmatprep.subr.mxu0 0.0
    %171 = vmatpush1.msra.mxu0 0.0
    %172 = vmatprep.subr.mxu0 0.0
    %173 = vmatpush1.msra.mxu0 0.0
    %174 = vmatprep.subr.mxu0 0.0
    %175 = vmatpush1.msra.mxu0 0.0
    %176 = vmatprep.subr.mxu0 0.0
    %177 = vmatpush1.msra.mxu0 0.0
    %178 = vmatprep.subr.mxu0 0.0
    %179 = vmatpush1.msra.mxu0 0.0
    %180 = vmatprep.subr.mxu0 0.0
    %181 = vmatpush1.msra.mxu0 0.0
    %182 = vmatprep.subr.mxu0 0.0
    %183 = vmatpush1.msra.mxu0 0.0
    %184 = vmatprep.subr.mxu0 0.0
    %185 = vmatpush1.msra.mxu0 0.0
    %186 = vmatprep.subr.mxu0 0.0
    %187 = vmatpush1.msra.mxu0 0.0
    %188 = vmatprep.subr.mxu0 0.0
    %189 = vmatpush1.msra.mxu0 0.0
    %190 = vmatprep.subr.mxu0 0.0
    %191 = vmatpush1.msra.mxu0 0.0
    %192 = vmatprep.subr.mxu0 0.0
    %193 = vmatpush1.msra.mxu0 0.0
    %194 = vmatprep.subr.mxu0 0.0
    %195 = vmatpush1.msra.mxu0 0.0
    %196 = vmatprep.subr.mxu0 0.0
    %197 = vmatpush1.msra.mxu0 0.0
    %198 = vmatprep.subr.mxu0 0.0
    %199 = vmatpush1.msra.mxu0 0.0
    %200 = vmatprep.subr.mxu0 0.0
    %201 = vmatpush1.msra.mxu0 0.0
    %202 = vmatprep.subr.mxu0 0.0
    %203 = vmatpush1.msra.mxu0 0.0
    %204 = vmatprep.subr.mxu0 0.0
    %205 = vmatpush1.msra.mxu0 0.0
    %206 = vmatprep.subr.mxu0 0.0
    %207 = vmatpush1.msra.mxu0 0.0
    %208 = vmatprep.subr.mxu0 0.0
    %209 = vmatpush1.msra.mxu0 0.0
    %210 = vmatprep.subr.mxu0 0.0
    %211 = vmatpush1.msra.mxu0 0.0
    %212 = vmatprep.subr.mxu0 0.0
    %213 = vmatpush1.msra.mxu0 0.0
    %214 = vmatprep.subr.mxu0 0.0
    %215 = vmatpush1.msra.mxu0 0.0
    %216 = vmatprep.subr.mxu0 0.0
    %217 = vmatpush1.msra.mxu0 0.0
    %218 = vmatprep.subr.mxu0 0.0
    %219 = vmatpush1.msra.mxu0 0.0
    %220 = vmatprep.subr.mxu0 0.0
    %221 = vmatpush1.msra.mxu0 0.0
    %222 = vmatprep.subr.mxu0 0.0
    %223 = vmatpush1.msra.mxu0 0.0
    %224 = vmatprep.subr.mxu0 0.0
    %225 = vmatpush1.msra.mxu0 0.0
    %226 = vmatprep.subr.mxu0 0.0
    %227 = vmatpush1.msra.mxu0 0.0
    %228 = vmatprep.mubr.f32.mxu0 0.0
    %229 = vmatmul.mubr.f32.gmra.mrb[0].mxu0 %v162
    %v230 = vpop.f32.mrb[0].mxu0
    %v231 = vadd.f32 %v158, %v230
    %v232 = vpop.f32.mrb[0].mxu0
    %233 = vdwg.mxu0
    %v234 = vld [vmem:[%s2] sm:$0xff]
    %v235 = vld [vmem:[#allocation5] sm:$0xff]
    %vm236 = vcmask 64512
    %v238 = vsel %vm236, %v234, 0
    %240 = vmatprep.subr.mxu0 0.0
    %241 = vmatpush1.msra.mxu0 %v235
    %242 = vmatprep.subr.mxu0 0.0
    %243 = vmatpush1.msra.mxu0 0.0
    %244 = vmatprep.subr.mxu0 0.0
    %245 = vmatpush1.msra.mxu0 0.0
    %246 = vmatprep.subr.mxu0 0.0
    %247 = vmatpush1.msra.mxu0 0.0
    %248 = vmatprep.subr.mxu0 0.0
    %249 = vmatpush1.msra.mxu0 0.0
    %250 = vmatprep.subr.mxu0 0.0
    %251 = vmatpush1.msra.mxu0 0.0
    %252 = vmatprep.subr.mxu0 0.0
    %253 = vmatpush1.msra.mxu0 0.0
    %254 = vmatprep.subr.mxu0 0.0
    %255 = vmatpush1.msra.mxu0 0.0
    %256 = vmatprep.subr.mxu0 0.0
    %257 = vmatpush1.msra.mxu0 0.0
    %258 = vmatprep.subr.mxu0 0.0
    %259 = vmatpush1.msra.mxu0 0.0
    %260 = vmatprep.subr.mxu0 0.0
    %261 = vmatpush1.msra.mxu0 0.0
    %262 = vmatprep.subr.mxu0 0.0
    %263 = vmatpush1.msra.mxu0 0.0
    %264 = vmatprep.subr.mxu0 0.0
    %265 = vmatpush1.msra.mxu0 0.0
    %266 = vmatprep.subr.mxu0 0.0
    %267 = vmatpush1.msra.mxu0 0.0
    %268 = vmatprep.subr.mxu0 0.0
    %269 = vmatpush1.msra.mxu0 0.0
    %270 = vmatprep.subr.mxu0 0.0
    %271 = vmatpush1.msra.mxu0 0.0
    %272 = vmatprep.subr.mxu0 0.0
    %273 = vmatpush1.msra.mxu0 0.0
    %274 = vmatprep.subr.mxu0 0.0
    %275 = vmatpush1.msra.mxu0 0.0
    %276 = vmatprep.subr.mxu0 0.0
    %277 = vmatpush1.msra.mxu0 0.0
    %278 = vmatprep.subr.mxu0 0.0
    %279 = vmatpush1.msra.mxu0 0.0
    %280 = vmatprep.subr.mxu0 0.0
    %281 = vmatpush1.msra.mxu0 0.0
    %282 = vmatprep.subr.mxu0 0.0
    %283 = vmatpush1.msra.mxu0 0.0
    %284 = vmatprep.subr.mxu0 0.0
    %285 = vmatpush1.msra.mxu0 0.0
    %286 = vmatprep.subr.mxu0 0.0
    %287 = vmatpush1.msra.mxu0 0.0
    %288 = vmatprep.subr.mxu0 0.0
    %289 = vmatpush1.msra.mxu0 0.0
    %290 = vmatprep.subr.mxu0 0.0
    %291 = vmatpush1.msra.mxu0 0.0
    %292 = vmatprep.subr.mxu0 0.0
    %293 = vmatpush1.msra.mxu0 0.0
    %294 = vmatprep.subr.mxu0 0.0
    %295 = vmatpush1.msra.mxu0 0.0
    %296 = vmatprep.subr.mxu0 0.0
    %297 = vmatpush1.msra.mxu0 0.0
    %298 = vmatprep.subr.mxu0 0.0
    %299 = vmatpush1.msra.mxu0 0.0
    %300 = vmatprep.subr.mxu0 0.0
    %301 = vmatpush1.msra.mxu0 0.0
    %302 = vmatprep.subr.mxu0 0.0
    %303 = vmatpush1.msra.mxu0 0.0
    %304 = vmatprep.mubr.f32.mxu0 0.0
    %305 = vmatmul.mubr.f32.gmra.mrb[0].mxu0 %v238
    %v306 = vpop.f32.mrb[0].mxu0
    %v307 = vadd.f32 0.0, %v306
    %v308 = vpop.f32.mrb[0].mxu0
    %309 = vdwg.mxu0
    %v310 = vadd.f32 %v231, %v307
    %v311 = vld [vmem:[#allocation3] sm:$0xff]
    %v312 = vld [vmem:[#allocation7] sm:$0xff]
    %v314 = vsel %vm236, %v311, 0
    %316 = vmatprep.subr.mxu0 0.0
    %317 = vmatpush1.msra.mxu0 %v312
    %318 = vmatprep.subr.mxu0 0.0
    %319 = vmatpush1.msra.mxu0 0.0
    %320 = vmatprep.subr.mxu0 0.0
    %321 = vmatpush1.msra.mxu0 0.0
    %322 = vmatprep.subr.mxu0 0.0
    %323 = vmatpush1.msra.mxu0 0.0
    %324 = vmatprep.subr.mxu0 0.0
    %325 = vmatpush1.msra.mxu0 0.0
    %326 = vmatprep.subr.mxu0 0.0
    %327 = vmatpush1.msra.mxu0 0.0
    %328 = vmatprep.subr.mxu0 0.0
    %329 = vmatpush1.msra.mxu0 0.0
    %330 = vmatprep.subr.mxu0 0.0
    %331 = vmatpush1.msra.mxu0 0.0
    %332 = vmatprep.subr.mxu0 0.0
    %333 = vmatpush1.msra.mxu0 0.0
    %334 = vmatprep.subr.mxu0 0.0
    %335 = vmatpush1.msra.mxu0 0.0
    %336 = vmatprep.subr.mxu0 0.0
    %337 = vmatpush1.msra.mxu0 0.0
    %338 = vmatprep.subr.mxu0 0.0
    %339 = vmatpush1.msra.mxu0 0.0
    %340 = vmatprep.subr.mxu0 0.0
    %341 = vmatpush1.msra.mxu0 0.0
    %342 = vmatprep.subr.mxu0 0.0
    %343 = vmatpush1.msra.mxu0 0.0
    %344 = vmatprep.subr.mxu0 0.0
    %345 = vmatpush1.msra.mxu0 0.0
    %346 = vmatprep.subr.mxu0 0.0
    %347 = vmatpush1.msra.mxu0 0.0
    %348 = vmatprep.subr.mxu0 0.0
    %349 = vmatpush1.msra.mxu0 0.0
    %350 = vmatprep.subr.mxu0 0.0
    %351 = vmatpush1.msra.mxu0 0.0
    %352 = vmatprep.subr.mxu0 0.0
    %353 = vmatpush1.msra.mxu0 0.0
    %354 = vmatprep.subr.mxu0 0.0
    %355 = vmatpush1.msra.mxu0 0.0
    %356 = vmatprep.subr.mxu0 0.0
    %357 = vmatpush1.msra.mxu0 0.0
    %358 = vmatprep.subr.mxu0 0.0
    %359 = vmatpush1.msra.mxu0 0.0
    %360 = vmatprep.subr.mxu0 0.0
    %361 = vmatpush1.msra.mxu0 0.0
    %362 = vmatprep.subr.mxu0 0.0
    %363 = vmatpush1.msra.mxu0 0.0
    %364 = vmatprep.subr.mxu0 0.0
    %365 = vmatpush1.msra.mxu0 0.0
    %366 = vmatprep.subr.mxu0 0.0
    %367 = vmatpush1.msra.mxu0 0.0
    %368 = vmatprep.subr.mxu0 0.0
    %369 = vmatpush1.msra.mxu0 0.0
    %370 = vmatprep.subr.mxu0 0.0
    %371 = vmatpush1.msra.mxu0 0.0
    %372 = vmatprep.subr.mxu0 0.0
    %373 = vmatpush1.msra.mxu0 0.0
    %374 = vmatprep.subr.mxu0 0.0
    %375 = vmatpush1.msra.mxu0 0.0
    %376 = vmatprep.subr.mxu0 0.0
    %377 = vmatpush1.msra.mxu0 0.0
    %378 = vmatprep.subr.mxu0 0.0
    %379 = vmatpush1.msra.mxu0 0.0
    %380 = vmatprep.mubr.f32.mxu0 0.0
    %381 = vmatmul.mubr.f32.gmra.mrb[0].mxu0 %v314
    %v382 = vpop.f32.mrb[0].mxu0
    %v383 = vadd.f32 0.0, %v382
    %v384 = vpop.f32.mrb[0].mxu0
    %385 = vdwg.mxu0
    %v386 = vadd.f32 %v310, %v383
    %v387 = vld [vmem:[%s8] sm:$0x1]
    %v389 = vlaneseq
    %v390 = vshrl.u32 %v389, 7
    %v391 = vsub.s32 0, %v390
    %v392 = vrot.slane %v387, %v391
    %v394 = vadd.f32 %v386, %v392
    %v395 = vmax.f32 %v394, 0.0
    %v396 = vld [vmem:[%s9] sm:$0xff]
    %v397 = vld [vmem:[%s9 + $0x8] sm:$0xff]
    %v398 = vld [vmem:[%s9 + $0x10] sm:$0xff]
    %v399 = vld [vmem:[%s9 + $0x18] sm:$0xff]
    %v400 = vld [vmem:[%s10] sm:$0x1]
    %v402 = vlaneseq
    %v403 = vshrl.u32 %v402, 7
    %v404 = vsub.s32 0, %v403
    %v405 = vrot.slane %v400, %v404
    %vm407 = vcmask 261120
    %v409 = vsel %vm407, %v395, 0
    %411 = vmatprep.subr.mxu0 0.0
    %412 = vmatpush1.msra.mxu0 %v396
    %413 = vmatprep.subr.mxu0 0.0
    %414 = vmatpush1.msra.mxu0 %v397
    %415 = vmatprep.subr.mxu0 0.0
    %416 = vmatpush1.msra.mxu0 %v398
    %417 = vmatprep.subr.mxu0 0.0
    %418 = vmatpush1.msra.mxu0 %v399
    %419 = vmatprep.subr.mxu0 0.0
    %420 = vmatpush1.msra.mxu0 0.0
    %421 = vmatprep.subr.mxu0 0.0
    %422 = vmatpush1.msra.mxu0 0.0
    %423 = vmatprep.subr.mxu0 0.0
    %424 = vmatpush1.msra.mxu0 0.0
    %425 = vmatprep.subr.mxu0 0.0
    %426 = vmatpush1.msra.mxu0 0.0
    %427 = vmatprep.subr.mxu0 0.0
    %428 = vmatpush1.msra.mxu0 0.0
    %429 = vmatprep.subr.mxu0 0.0
    %430 = vmatpush1.msra.mxu0 0.0
    %431 = vmatprep.subr.mxu0 0.0
    %432 = vmatpush1.msra.mxu0 0.0
    %433 = vmatprep.subr.mxu0 0.0
    %434 = vmatpush1.msra.mxu0 0.0
    %435 = vmatprep.subr.mxu0 0.0
    %436 = vmatpush1.msra.mxu0 0.0
    %437 = vmatprep.subr.mxu0 0.0
    %438 = vmatpush1.msra.mxu0 0.0
    %439 = vmatprep.subr.mxu0 0.0
    %440 = vmatpush1.msra.mxu0 0.0
    %441 = vmatprep.subr.mxu0 0.0
    %442 = vmatpush1.msra.mxu0 0.0
    %443 = vmatprep.subr.mxu0 0.0
    %444 = vmatpush1.msra.mxu0 0.0
    %445 = vmatprep.subr.mxu0 0.0
    %446 = vmatpush1.msra.mxu0 0.0
    %447 = vmatprep.subr.mxu0 0.0
    %448 = vmatpush1.msra.mxu0 0.0
    %449 = vmatprep.subr.mxu0 0.0
    %450 = vmatpush1.msra.mxu0 0.0
    %451 = vmatprep.subr.mxu0 0.0
    %452 = vmatpush1.msra.mxu0 0.0
    %453 = vmatprep.subr.mxu0 0.0
    %454 = vmatpush1.msra.mxu0 0.0
    %455 = vmatprep.subr.mxu0 0.0
    %456 = vmatpush1.msra.mxu0 0.0
    %457 = vmatprep.subr.mxu0 0.0
    %458 = vmatpush1.msra.mxu0 0.0
    %459 = vmatprep.subr.mxu0 0.0
    %460 = vmatpush1.msra.mxu0 0.0
    %461 = vmatprep.subr.mxu0 0.0
    %462 = vmatpush1.msra.mxu0 0.0
    %463 = vmatprep.subr.mxu0 0.0
    %464 = vmatpush1.msra.mxu0 0.0
    %465 = vmatprep.subr.mxu0 0.0
    %466 = vmatpush1.msra.mxu0 0.0
    %467 = vmatprep.subr.mxu0 0.0
    %468 = vmatpush1.msra.mxu0 0.0
    %469 = vmatprep.subr.mxu0 0.0
    %470 = vmatpush1.msra.mxu0 0.0
    %471 = vmatprep.subr.mxu0 0.0
    %472 = vmatpush1.msra.mxu0 0.0
    %473 = vmatprep.subr.mxu0 0.0
    %474 = vmatpush1.msra.mxu0 0.0
    %475 = vmatprep.mubr.f32.mxu0 0.0
    %476 = vmatmul.mubr.f32.gmra.mrb[0].mxu0 %v409
    %v477 = vpop.f32.mrb[0].mxu0
    %v478 = vadd.f32 %v405, %v477
    %v479 = vpop.f32.mrb[0].mxu0
    %480 = vdwg.mxu0
    %v481 = vmax.f32 %v478, 0.0
    %v482 = vld [vmem:[%s11] sm:$0x1]
    %v484 = vlaneseq
    %v485 = vshrl.u32 %v484, 7
    %v486 = vsub.s32 0, %v485
    %v487 = vrot.slane %v482, %v486
    %v489 = vmul.f32 %v481, %v487
    %v490 = vsel %vm87, %v489, 0.0
    %491 = vadd.xlane.f32.xlu0 %v490
    %v492 = vpop.xlane.xlu0 %491
    %v493 = vld [vmem:[#allocation2] sm:$0x1]
    %v495 = vlaneseq
    %v496 = vshrl.u32 %v495, 7
    %v497 = vsub.s32 0, %v496
    %v498 = vrot.slane %v493, %v497
    %v500 = vadd.f32 %v492, %v498
    %vm501 = vcmask 7168
    %502 = vst.msk [vmem:[%s13] sm:$0xff] %vm501, %v500
    // Predicated region
    $region66: #{tpu_custom_call.1} parent=1 // pred_check
      _
    $region67: #{tpu_custom_call.1} parent=1 // pred_check_branch
      %504 = sbr.rel (0) target = $region69
    $region68: #{tpu_custom_call.1} parent=1 // pred_region
      _
    $region69: #{tpu_custom_call.1} parent=1 // pred_fallthru
      _
    // Predicated region
    $region70: #{tpu_custom_call.1} parent=1 // pred_check
      _
    $region71: #{tpu_custom_call.1} parent=1 // pred_check_branch
      %506 = sbr.rel (0) target = $region73
    $region72: #{tpu_custom_call.1} parent=1 // pred_region
      _
    $region73: #{tpu_custom_call.1} parent=1 // pred_fallthru
      _
    %507 = vsyncpa [#allocation4], 1
    %508 = vsyncpa [#allocation6], 1

</llo_original>
